<compile_context>
chip_gen: v6e
topology: v6e:2x2x1
jax: 0.10.0
libtpu: 0.0.40
codegen_flags: <defaults>
</compile_context>

<pallas_src>
import math
from functools import partial

import jax
import jax.numpy as jnp
from jax import lax
from jax.experimental import pallas as pl
from jax.experimental.pallas import tpu as pltpu


def _round_up(a: int, m: int) -> int:
    return (a + m - 1) // m * m


def _nufa_kernel(x_ref, w_ref, o_ref, *, rows, cols):
    """One grid step = one block of Bt batch elements.

    x_ref: (Bt, N, N) f32 VMEM
    w_ref: (rows*cols,) f32 SMEM, w[i*cols + j] = coef[i,j] / (rows*cols)**(i+j+2)
    o_ref: (Bt, 1, 128) f32 VMEM  -- per-batch scalar, splatted over 128 lanes
    """
    x = x_ref[...]                                      # (Bt, N, N)
    bt, n, _ = x.shape

    # Identity mask used to turn a row-form vector (Bt,1,N) into column form
    # (Bt,N,1) via a lane reduction.  This avoids minor-dim reshapes/transposes
    # (e.g. v[:, :, None]) that Mosaic may not relayout; everything below is
    # broadcasts + lane/sublane reductions only.
    eye = (lax.broadcasted_iota(jnp.int32, (1, n, n), 1)
           == lax.broadcasted_iota(jnp.int32, (1, n, n), 2)).astype(jnp.float32)

    # v_row[b, 0, m] = colsum(x_b)[m] = (1^T x_b)[m]
    v_row = jnp.sum(x, axis=1, keepdims=True)           # (Bt, 1, N)

    acc = jnp.zeros((bt, 1, 1), jnp.float32)
    for i in range(rows):
        # Column form of the current colsum vector: v_col[b, n, 0] = v_row[b, 0, n]
        v_col = jnp.sum(v_row * eye, axis=2, keepdims=True)        # (Bt, N, 1)
        # One more power:  v_row[b,0,m] = sum_n v_col[b,n] * x[b,n,m]
        #                              = colsum(x_b^(i+2))[m]
        v_row = jnp.sum(v_col * x, axis=1, keepdims=True)          # (Bt, 1, N)

        # Horner over j:  poly = sum_j w[i,j] * v_row**(j+1)
        #               = v*(w0 + v*(w1 + v*(w2 + ... )))
        poly = jnp.zeros_like(v_row) + w_ref[i * cols + (cols - 1)]
        for j in range(cols - 2, -1, -1):
            poly = poly * v_row + w_ref[i * cols + j]
        poly = poly * v_row

        # trace((ones @ x^(i+2)) ** (j+1)) = sum_m colsum(x^(i+2))[m]**(j+1),
        # already weighted by the prefolded coefficients -> one lane reduce per i.
        acc = acc + jnp.sum(poly, axis=2, keepdims=True)            # (Bt, 1, 1)

    o_ref[...] = jnp.broadcast_to(acc, o_ref.shape)


def nufa_coef_forward(x, coef):
    x = jnp.asarray(x, jnp.float32)
    if x.ndim == 2:
        x = x[None]
    assert x.ndim == 3 and x.shape[-1] == x.shape[-2]
    B, N, _ = x.shape
    rows, cols = coef.shape

    # Fold the (rows*cols)^(i+j+2) normalization into the coefficients and
    # flatten to 1-D so the SMEM footprint is a handful of words.
    i_idx = jnp.arange(rows, dtype=jnp.float32)[:, None]
    j_idx = jnp.arange(cols, dtype=jnp.float32)[None, :]
    norm = jnp.float32(rows * cols) ** (i_idx + j_idx + 2.0)
    w = (coef.astype(jnp.float32) / norm).reshape(rows * cols)      # (rows*cols,)

    # Batch block size: largest block whose lane/sublane-padded VMEM footprint
    # stays within ~2 MiB per pipeline buffer (double-buffered by BlockSpec),
    # leaving headroom for in-kernel temporaries.  Safe on v7x (64 MiB VMEM)
    # and comfortable on v5e/v6e; vmem_limit_bytes raised explicitly below.
    padded_bytes_per_mat = 4 * _round_up(N, 8) * _round_up(N, 128)
    bt = max(1, min(1024, (2 * 1024 * 1024) // padded_bytes_per_mat))
    block_b = min(bt, B)
    B_pad = _round_up(B, block_b)
    if B_pad != B:
        # Zero matrices contribute exactly 0 to the output; sliced off below.
        x = jnp.concatenate([x, jnp.zeros((B_pad - B, N, N), jnp.float32)], axis=0)
    grid = (B_pad // block_b,)

    out = pl.pallas_call(
        partial(_nufa_kernel, rows=rows, cols=cols),
        out_shape=jax.ShapeDtypeStruct((B_pad, 1, 128), jnp.float32),
        grid=grid,
        in_specs=[
            pl.BlockSpec((block_b, N, N), lambda g: (g, 0, 0)),      # x block (VMEM)
            pl.BlockSpec(memory_space=pltpu.MemorySpace.SMEM),       # coefficients
        ],
        out_specs=pl.BlockSpec((block_b, 1, 128), lambda g: (g, 0, 0)),
        compiler_params=pltpu.CompilerParams(
            dimension_semantics=("parallel",),      # batch axis shardable (v7x megacore)
            vmem_limit_bytes=48 * 1024 * 1024,
        ),
    )(x, w)
    return out[:B, 0, 0]


def nufa_ref(x, coef):
    """Pure-JAX reference mirroring the PyTorch forward semantics."""
    x = jnp.asarray(x, jnp.float32)
    if x.ndim == 2:
        x = x[None]
    B, N, _ = x.shape
    rows, cols = coef.shape
    ones = jnp.ones((N, N), jnp.float32)
    hi = jax.lax.Precision.HIGHEST
    out = jnp.zeros((B,), jnp.float32)
    p = jnp.einsum('bij,bjk->bik', x, x, precision=hi)               # x^2
    for i in range(rows):
        if i > 0:
            p = jnp.einsum('bij,bjk->bik', x, p, precision=hi)       # x^(i+2)
        m = jnp.einsum('rk,bkc->brc', ones, p, precision=hi)         # ones @ x^(i+2)
        for j in range(cols):
            tr = jnp.trace(m ** (j + 1), axis1=-2, axis2=-1)         # (B,)
            out = out + coef[i, j] * tr / float(rows * cols) ** (i + j + 2)
    return out


if __name__ == "__main__":
    key = jax.random.PRNGKey(0)
    kx, kc = jax.random.split(key)

    B, N = 2, 16
    rows, cols = 3, 4

    # Deterministic inputs / parameters (kaiming_normal_-style std = sqrt(2/fan_in)).
    x = jax.random.normal(kx, (B, N, N), jnp.float32) * 0.2
    coef = jax.random.normal(kc, (rows, cols), jnp.float32) * math.sqrt(2.0 / cols)

    out = jax.block_until_ready(nufa_coef_forward(x, coef))
    ref = jax.block_until_ready(nufa_ref(x, coef))

    assert out.shape == (B,)
    if not jnp.allclose(out, ref, rtol=1e-2, atol=1e-4):
        raise AssertionError(f"kernel/reference mismatch: {out} vs {ref}")
    print("KERNEL_OK")
</pallas_src>

<mosaic_0001>
module attributes {stable_mosaic.version = 11 : i64} {
  func.func @_nufa_kernel(%arg0: i32, %arg1: memref<2x16x16xf32, #tpu.memory_space<vmem>>, %arg2: memref<12xf32, #tpu.memory_space<smem>>, %arg3: memref<2x1x128xf32, #tpu.memory_space<vmem>>) attributes {dimension_semantics = [#tpu.dimension_semantics<parallel>], iteration_bounds = array<i64: 1>, scalar_prefetch = 0 : i64, scratch_operands = 0 : i64, tpu.core_type = #tpu.core_type<tc>, window_params = [{transform_indices = @transform_0, window_bounds = array<i64: 2, 16, 16>}, {transform_indices = @transform_1, window_bounds = array<i64: 12>}, {transform_indices = @transform_2, window_bounds = array<i64: 2, 1, 128>}]} {
    %c0 = arith.constant 0 : index
    %c0_0 = arith.constant 0 : index
    %c0_1 = arith.constant 0 : index
    %0 = vector.load %arg1[%c0, %c0_0, %c0_1] : memref<2x16x16xf32, #tpu.memory_space<vmem>>, vector<2x16x16xf32>
    %1 = tpu.iota {dimensions = array<i32: 1>} : vector<1x16x16xi32>
    %2 = tpu.iota {dimensions = array<i32: 2>} : vector<1x16x16xi32>
    %3 = arith.cmpi eq, %1, %2 : vector<1x16x16xi32>
    %4 = arith.extui %3 : vector<1x16x16xi1> to vector<1x16x16xi32>
    %5 = arith.sitofp %4 : vector<1x16x16xi32> to vector<1x16x16xf32>
    %cst = arith.constant dense<0.000000e+00> : vector<2x16xf32>
    %6 = vector.multi_reduction <add>, %0, %cst [1] : vector<2x16x16xf32> to vector<2x16xf32>
    %7 = vector.shape_cast %6 : vector<2x16xf32> to vector<2x1x16xf32>
    %cst_2 = arith.constant 0.000000e+00 : f32
    %8 = vector.broadcast %cst_2 : f32 to vector<2x1x1xf32>
    %9 = vector.broadcast %7 : vector<2x1x16xf32> to vector<2x16x16xf32>
    %10 = vector.broadcast %5 : vector<1x16x16xf32> to vector<2x16x16xf32>
    %11 = arith.mulf %9, %10 : vector<2x16x16xf32>
    %cst_3 = arith.constant dense<0.000000e+00> : vector<2x16xf32>
    %12 = vector.multi_reduction <add>, %11, %cst_3 [2] : vector<2x16x16xf32> to vector<2x16xf32>
    %13 = vector.shape_cast %12 : vector<2x16xf32> to vector<2x16x1xf32>
    %14 = vector.broadcast %13 : vector<2x16x1xf32> to vector<2x16x16xf32>
    %15 = arith.mulf %14, %0 : vector<2x16x16xf32>
    %cst_4 = arith.constant dense<0.000000e+00> : vector<2x16xf32>
    %16 = vector.multi_reduction <add>, %15, %cst_4 [1] : vector<2x16x16xf32> to vector<2x16xf32>
    %17 = vector.shape_cast %16 : vector<2x16xf32> to vector<2x1x16xf32>
    %cst_5 = arith.constant 0.000000e+00 : f32
    %18 = vector.broadcast %cst_5 : f32 to vector<2x1x16xf32>
    %c3 = arith.constant 3 : index
    %19 = memref.load %arg2[%c3] : memref<12xf32, #tpu.memory_space<smem>>
    %20 = vector.broadcast %19 : f32 to vector<2x1x16xf32>
    %21 = arith.addf %18, %20 : vector<2x1x16xf32>
    %22 = arith.mulf %21, %17 : vector<2x1x16xf32>
    %c2 = arith.constant 2 : index
    %23 = memref.load %arg2[%c2] : memref<12xf32, #tpu.memory_space<smem>>
    %24 = vector.broadcast %23 : f32 to vector<2x1x16xf32>
    %25 = arith.addf %22, %24 : vector<2x1x16xf32>
    %26 = arith.mulf %25, %17 : vector<2x1x16xf32>
    %c1 = arith.constant 1 : index
    %27 = memref.load %arg2[%c1] : memref<12xf32, #tpu.memory_space<smem>>
    %28 = vector.broadcast %27 : f32 to vector<2x1x16xf32>
    %29 = arith.addf %26, %28 : vector<2x1x16xf32>
    %30 = arith.mulf %29, %17 : vector<2x1x16xf32>
    %c0_6 = arith.constant 0 : index
    %31 = memref.load %arg2[%c0_6] : memref<12xf32, #tpu.memory_space<smem>>
    %32 = vector.broadcast %31 : f32 to vector<2x1x16xf32>
    %33 = arith.addf %30, %32 : vector<2x1x16xf32>
    %34 = arith.mulf %33, %17 : vector<2x1x16xf32>
    %cst_7 = arith.constant dense<0.000000e+00> : vector<2x1xf32>
    %35 = vector.multi_reduction <add>, %34, %cst_7 [2] : vector<2x1x16xf32> to vector<2x1xf32>
    %36 = vector.shape_cast %35 : vector<2x1xf32> to vector<2x1x1xf32>
    %37 = arith.addf %8, %36 : vector<2x1x1xf32>
    %38 = vector.broadcast %17 : vector<2x1x16xf32> to vector<2x16x16xf32>
    %39 = vector.broadcast %5 : vector<1x16x16xf32> to vector<2x16x16xf32>
    %40 = arith.mulf %38, %39 : vector<2x16x16xf32>
    %cst_8 = arith.constant dense<0.000000e+00> : vector<2x16xf32>
    %41 = vector.multi_reduction <add>, %40, %cst_8 [2] : vector<2x16x16xf32> to vector<2x16xf32>
    %42 = vector.shape_cast %41 : vector<2x16xf32> to vector<2x16x1xf32>
    %43 = vector.broadcast %42 : vector<2x16x1xf32> to vector<2x16x16xf32>
    %44 = arith.mulf %43, %0 : vector<2x16x16xf32>
    %cst_9 = arith.constant dense<0.000000e+00> : vector<2x16xf32>
    %45 = vector.multi_reduction <add>, %44, %cst_9 [1] : vector<2x16x16xf32> to vector<2x16xf32>
    %46 = vector.shape_cast %45 : vector<2x16xf32> to vector<2x1x16xf32>
    %cst_10 = arith.constant 0.000000e+00 : f32
    %47 = vector.broadcast %cst_10 : f32 to vector<2x1x16xf32>
    %c7 = arith.constant 7 : index
    %48 = memref.load %arg2[%c7] : memref<12xf32, #tpu.memory_space<smem>>
    %49 = vector.broadcast %48 : f32 to vector<2x1x16xf32>
    %50 = arith.addf %47, %49 : vector<2x1x16xf32>
    %51 = arith.mulf %50, %46 : vector<2x1x16xf32>
    %c6 = arith.constant 6 : index
    %52 = memref.load %arg2[%c6] : memref<12xf32, #tpu.memory_space<smem>>
    %53 = vector.broadcast %52 : f32 to vector<2x1x16xf32>
    %54 = arith.addf %51, %53 : vector<2x1x16xf32>
    %55 = arith.mulf %54, %46 : vector<2x1x16xf32>
    %c5 = arith.constant 5 : index
    %56 = memref.load %arg2[%c5] : memref<12xf32, #tpu.memory_space<smem>>
    %57 = vector.broadcast %56 : f32 to vector<2x1x16xf32>
    %58 = arith.addf %55, %57 : vector<2x1x16xf32>
    %59 = arith.mulf %58, %46 : vector<2x1x16xf32>
    %c4 = arith.constant 4 : index
    %60 = memref.load %arg2[%c4] : memref<12xf32, #tpu.memory_space<smem>>
    %61 = vector.broadcast %60 : f32 to vector<2x1x16xf32>
    %62 = arith.addf %59, %61 : vector<2x1x16xf32>
    %63 = arith.mulf %62, %46 : vector<2x1x16xf32>
    %cst_11 = arith.constant dense<0.000000e+00> : vector<2x1xf32>
    %64 = vector.multi_reduction <add>, %63, %cst_11 [2] : vector<2x1x16xf32> to vector<2x1xf32>
    %65 = vector.shape_cast %64 : vector<2x1xf32> to vector<2x1x1xf32>
    %66 = arith.addf %37, %65 : vector<2x1x1xf32>
    %67 = vector.broadcast %46 : vector<2x1x16xf32> to vector<2x16x16xf32>
    %68 = vector.broadcast %5 : vector<1x16x16xf32> to vector<2x16x16xf32>
    %69 = arith.mulf %67, %68 : vector<2x16x16xf32>
    %cst_12 = arith.constant dense<0.000000e+00> : vector<2x16xf32>
    %70 = vector.multi_reduction <add>, %69, %cst_12 [2] : vector<2x16x16xf32> to vector<2x16xf32>
    %71 = vector.shape_cast %70 : vector<2x16xf32> to vector<2x16x1xf32>
    %72 = vector.broadcast %71 : vector<2x16x1xf32> to vector<2x16x16xf32>
    %73 = arith.mulf %72, %0 : vector<2x16x16xf32>
    %cst_13 = arith.constant dense<0.000000e+00> : vector<2x16xf32>
    %74 = vector.multi_reduction <add>, %73, %cst_13 [1] : vector<2x16x16xf32> to vector<2x16xf32>
    %75 = vector.shape_cast %74 : vector<2x16xf32> to vector<2x1x16xf32>
    %cst_14 = arith.constant 0.000000e+00 : f32
    %76 = vector.broadcast %cst_14 : f32 to vector<2x1x16xf32>
    %c11 = arith.constant 11 : index
    %77 = memref.load %arg2[%c11] : memref<12xf32, #tpu.memory_space<smem>>
    %78 = vector.broadcast %77 : f32 to vector<2x1x16xf32>
    %79 = arith.addf %76, %78 : vector<2x1x16xf32>
    %80 = arith.mulf %79, %75 : vector<2x1x16xf32>
    %c10 = arith.constant 10 : index
    %81 = memref.load %arg2[%c10] : memref<12xf32, #tpu.memory_space<smem>>
    %82 = vector.broadcast %81 : f32 to vector<2x1x16xf32>
    %83 = arith.addf %80, %82 : vector<2x1x16xf32>
    %84 = arith.mulf %83, %75 : vector<2x1x16xf32>
    %c9 = arith.constant 9 : index
    %85 = memref.load %arg2[%c9] : memref<12xf32, #tpu.memory_space<smem>>
    %86 = vector.broadcast %85 : f32 to vector<2x1x16xf32>
    %87 = arith.addf %84, %86 : vector<2x1x16xf32>
    %88 = arith.mulf %87, %75 : vector<2x1x16xf32>
    %c8 = arith.constant 8 : index
    %89 = memref.load %arg2[%c8] : memref<12xf32, #tpu.memory_space<smem>>
    %90 = vector.broadcast %89 : f32 to vector<2x1x16xf32>
    %91 = arith.addf %88, %90 : vector<2x1x16xf32>
    %92 = arith.mulf %91, %75 : vector<2x1x16xf32>
    %cst_15 = arith.constant dense<0.000000e+00> : vector<2x1xf32>
    %93 = vector.multi_reduction <add>, %92, %cst_15 [2] : vector<2x1x16xf32> to vector<2x1xf32>
    %94 = vector.shape_cast %93 : vector<2x1xf32> to vector<2x1x1xf32>
    %95 = arith.addf %66, %94 : vector<2x1x1xf32>
    %96 = vector.shape_cast %95 : vector<2x1x1xf32> to vector<2x1x1xf32>
    %97 = vector.broadcast %96 : vector<2x1x1xf32> to vector<2x1x128xf32>
    %c0_16 = arith.constant 0 : index
    %c0_17 = arith.constant 0 : index
    %c0_18 = arith.constant 0 : index
    %98 = vector.load %arg3[%c0_16, %c0_17, %c0_18] : memref<2x1x128xf32, #tpu.memory_space<vmem>>, vector<2x1x128xf32>
    tpu.vector_store %arg3[%c0_16, %c0_17, %c0_18], %97 {strides = array<i32>} : memref<2x1x128xf32, #tpu.memory_space<vmem>>, vector<2x1x128xf32>,
    return
  }
  func.func @transform_0(%arg0: i32) -> (i32, i32, i32) {
    %c0_i32 = arith.constant 0 : i32
    %c0_i32_0 = arith.constant 0 : i32
    %c0_i32_1 = arith.constant 0 : i32
    return %arg0, %c0_i32, %c0_i32_0 : i32, i32, i32
  }
  func.func @transform_1(%arg0: i32) -> i32 {
    %c0_i32 = arith.constant 0 : i32
    %c0_i32_0 = arith.constant 0 : i32
    return %c0_i32 : i32
  }
  func.func @transform_2(%arg0: i32) -> (i32, i32, i32) {
    %c0_i32 = arith.constant 0 : i32
    %c0_i32_0 = arith.constant 0 : i32
    %c0_i32_1 = arith.constant 0 : i32
    return %arg0, %c0_i32, %c0_i32_0 : i32, i32, i32
  }
}

</mosaic_0001>

<llo_original>
// kernel: tpu_custom_call.1
$region0: #{tpu_custom_call.1}
  #allocation0 [shape = 'u32[]', space=smem, size = 0x4, offset = 0x4, fixed_abs, tag = 'smem constant byte address 0x4 - core index']
  #allocation1 [shape = 'u32[144,128]{1,0:T(1,128)}', space=vmem, size = 0x12000, scoped, tag = 'internal scratch']
  %s0 = inlined_call_operand.hbm [shape: f32[2,16,16], index: 0, kind: input, shape index: {}]
  %s1 = inlined_call_operand.vmem [shape: f32[12], index: 1, kind: input, shape index: {}]
  %s2 = inlined_call_operand.hbm [shape: f32[2,1,128], index: 2, kind: output, shape index: {}]
  %s3 = sld [smem:[#allocation0]]
  $region26: #{tpu_custom_call.1} parent=0
    _
  %s5 = ssub.s32 1, %s3
  %s6 = scalar_select 0, %s5, %s3
  $region1: #{tpu_custom_call.1} parent=0
    #allocation2 [shape = 'u8[16384]{0}', space=vmem, size = 0x4000, scoped, tag = 'input window, operand 0, single buffered']
    #allocation3 [shape = 's32[1]{0}', space=sflag, size = 0x4, scoped, tag = 'scoped memory for tpu_custom_call.1']
    #allocation4 [shape = 's32[1]{0}', space=sflag, size = 0x4, scoped, tag = 'scoped memory for tpu_custom_call.1']
    #allocation5 [shape = 's32[1]{0}', space=sflag, size = 0x4, scoped, tag = 'scoped memory for tpu_custom_call.1']
    #allocation6 [shape = 'u8[512]{0}', space=smem, size = 0x200, scoped, tag = 'input window, operand 1, single buffered']
    #allocation7 [shape = 'u8[1024]{0}', space=vmem, size = 0x400, scoped, tag = 'output window, operand 0, single buffered']
    %7 = vsyncpa [#allocation3], 0
    %8 = vsyncpa [#allocation5], 0
    %9 = vsyncpa [#allocation4], 0
    // Predicated region
    $region2: #{tpu_custom_call.1} parent=1 // pred_check
      _
    $region3: #{tpu_custom_call.1} parent=1 // pred_check_branch
      %11 = sbr.rel (0) target = $region5
    $region4: #{tpu_custom_call.1} parent=1 // pred_region
      %s13 = ssub.s32 512, 512
      %14 = vsyncadd [#allocation3], %s13
      %s15 = sshll.u32 [#allocation2], 4
      %s16 = int_to_ptr.vmem [resolvable:$true] %s15
      %21 = dma.hbm_to_vmem [thread:$0]  %s0, 512, %s16, [#allocation3], 128, 128, 8
    $region5: #{tpu_custom_call.1} parent=1 // pred_fallthru
      _
    // Predicated region
    $region6: #{tpu_custom_call.1} parent=1 // pred_check
      _
    $region7: #{tpu_custom_call.1} parent=1 // pred_check_branch
      %23 = sbr.rel (0) target = $region9
    $region8: #{tpu_custom_call.1} parent=1 // pred_region
      %s25 = ssub.s32 16, 16
      %26 = vsyncadd [#allocation5], %s25
      %s28 = sshll.u32 %s1, 4
      %s29 = int_to_ptr.vmem [resolvable:$true] %s28
      %31 = dma.vmem_to_smem %s29, 16, [#allocation6], [#allocation5]
    $region9: #{tpu_custom_call.1} parent=1 // pred_fallthru
      _
    // Predicated region
    $region10: #{tpu_custom_call.1} parent=1 // pred_check
      _
    $region11: #{tpu_custom_call.1} parent=1 // pred_check_branch
      %33 = sbr.rel (0) target = $region13
    $region12: #{tpu_custom_call.1} parent=1 // pred_region
      %34 = dma.done [#allocation3], 512
    $region13: #{tpu_custom_call.1} parent=1 // pred_fallthru
      _
    // Predicated region
    $region14: #{tpu_custom_call.1} parent=1 // pred_check
      _
    $region15: #{tpu_custom_call.1} parent=1 // pred_check_branch
      %36 = sbr.rel (0) target = $region17
    $region16: #{tpu_custom_call.1} parent=1 // pred_region
      %37 = dma.done [#allocation5], 16
    $region17: #{tpu_custom_call.1} parent=1 // pred_fallthru
      _
    %38 = sfence
    %v39 = vld [vmem:[#allocation2] sm:$0xff]
    %v40 = vld [vmem:[#allocation2 + $0x8] sm:$0xff]
    %v41 = vld [vmem:[#allocation2 + $0x10] sm:$0xff]
    %v42 = vld [vmem:[#allocation2 + $0x18] sm:$0xff]
    %v43 = vlaneseq
    %v44 = vshrl.u32 %v43, 7
    %v45 = vadd.s32 %v44, 8
    %v46 = vlaneseq
    %v47 = vand.u32 %v46, 127
    %vm48 = vcmp.eq.s32.totalorder %v44, %v47
    %vm49 = vcmp.eq.s32.totalorder %v45, %v47
    %v50 = vsel %vm48, 1, 0
    %v51 = vsel %vm49, 1, 0
    %v52 = vcvt.s32.f32 %v50
    %v53 = vcvt.s32.f32 %v51
    %vm54 = vcmask 130048
    %v55 = vsel %vm54, %v39, 0.0
    %v56 = vsel %vm54, %v40, 0.0
    %v57 = vadd.f32 %v55, %v56
    %v58 = vrot.slane %v57, 4
    %v59 = vadd.f32 %v57, %v58
    %v60 = vrot.slane %v59, 2
    %v61 = vadd.f32 %v59, %v60
    %v62 = vrot.slane %v61, 1
    %v63 = vadd.f32 %v61, %v62
    %v64 = vsel %vm54, %v41, 0.0
    %v65 = vsel %vm54, %v42, 0.0
    %v66 = vadd.f32 %v64, %v65
    %v67 = vrot.slane %v66, 4
    %v68 = vadd.f32 %v66, %v67
    %v69 = vrot.slane %v68, 2
    %v70 = vadd.f32 %v68, %v69
    %v71 = vrot.slane %v70, 1
    %v72 = vadd.f32 %v70, %v71
    %v73 = vmul.f32 %v63, %v52
    %v74 = vmul.f32 %v63, %v53
    %v75 = vmul.f32 %v72, %v52
    %v76 = vmul.f32 %v72, %v53
    %v77 = vsel %vm54, %v73, 0.0
    %78 = vadd.xlane.f32.xlu0 %v77
    %v79 = vpop.xlane.xlu0 %78
    %v80 = vsel %vm54, %v74, 0.0
    %81 = vadd.xlane.f32.xlu0 %v80
    %v82 = vpop.xlane.xlu0 %81
    %v83 = vsel %vm54, %v75, 0.0
    %84 = vadd.xlane.f32.xlu0 %v83
    %v85 = vpop.xlane.xlu0 %84
    %v86 = vsel %vm54, %v76, 0.0
    %87 = vadd.xlane.f32.xlu0 %v86
    %v88 = vpop.xlane.xlu0 %87
    %v89 = vmul.f32 %v79, %v39
    %v90 = vmul.f32 %v82, %v40
    %v91 = vmul.f32 %v85, %v41
    %v92 = vmul.f32 %v88, %v42
    %v93 = vsel %vm54, %v89, 0.0
    %v94 = vsel %vm54, %v90, 0.0
    %v95 = vadd.f32 %v93, %v94
    %v96 = vrot.slane %v95, 4
    %v97 = vadd.f32 %v95, %v96
    %v98 = vrot.slane %v97, 2
    %v99 = vadd.f32 %v97, %v98
    %v100 = vrot.slane %v99, 1
    %v101 = vadd.f32 %v99, %v100
    %v102 = vsel %vm54, %v91, 0.0
    %v103 = vsel %vm54, %v92, 0.0
    %v104 = vadd.f32 %v102, %v103
    %v105 = vrot.slane %v104, 4
    %v106 = vadd.f32 %v104, %v105
    %v107 = vrot.slane %v106, 2
    %v108 = vadd.f32 %v106, %v107
    %v109 = vrot.slane %v108, 1
    %v110 = vadd.f32 %v108, %v109
    %s111 = sld [smem:[#allocation6 + $0x3]]
    %v112 = vstv %s111
    %v113 = vadd.f32 %v112, 0.0
    %v114 = vmul.f32 %v113, %v101
    %v115 = vmul.f32 %v113, %v110
    %s116 = sld [smem:[#allocation6 + $0x2]]
    %v117 = vstv %s116
    %v118 = vadd.f32 %v114, %v117
    %v119 = vadd.f32 %v115, %v117
    %v120 = vmul.f32 %v118, %v101
    %v121 = vmul.f32 %v119, %v110
    %s122 = sld [smem:[#allocation6 + $0x1]]
    %v123 = vstv %s122
    %v124 = vadd.f32 %v120, %v123
    %v125 = vadd.f32 %v121, %v123
    %v126 = vmul.f32 %v124, %v101
    %v127 = vmul.f32 %v125, %v110
    %s128 = sld [smem:[#allocation6]]
    %v129 = vstv %s128
    %v130 = vadd.f32 %v126, %v129
    %v131 = vadd.f32 %v127, %v129
    %v132 = vmul.f32 %v130, %v101
    %v133 = vmul.f32 %v131, %v110
    %v134 = vsel %vm54, %v132, 0.0
    %135 = vadd.xlane.f32.xlu0 %v134
    %v136 = vpop.xlane.xlu0 %135
    %v137 = vsel %vm54, %v133, 0.0
    %138 = vadd.xlane.f32.xlu0 %v137
    %v139 = vpop.xlane.xlu0 %138
    %v140 = vadd.f32 %v136, 0.0
    %v141 = vadd.f32 %v139, 0.0
    %v142 = vmul.f32 %v101, %v52
    %v143 = vmul.f32 %v101, %v53
    %v144 = vmul.f32 %v110, %v52
    %v145 = vmul.f32 %v110, %v53
    %v146 = vsel %vm54, %v142, 0.0
    %147 = vadd.xlane.f32.xlu0 %v146
    %v148 = vpop.xlane.xlu0 %147
    %v149 = vsel %vm54, %v143, 0.0
    %150 = vadd.xlane.f32.xlu0 %v149
    %v151 = vpop.xlane.xlu0 %150
    %v152 = vsel %vm54, %v144, 0.0
    %153 = vadd.xlane.f32.xlu0 %v152
    %v154 = vpop.xlane.xlu0 %153
    %v155 = vsel %vm54, %v145, 0.0
    %156 = vadd.xlane.f32.xlu0 %v155
    %v157 = vpop.xlane.xlu0 %156
    %v158 = vmul.f32 %v148, %v39
    %v159 = vmul.f32 %v151, %v40
    %v160 = vmul.f32 %v154, %v41
    %v161 = vmul.f32 %v157, %v42
    %v162 = vsel %vm54, %v158, 0.0
    %v163 = vsel %vm54, %v159, 0.0
    %v164 = vadd.f32 %v162, %v163
    %v165 = vrot.slane %v164, 4
    %v166 = vadd.f32 %v164, %v165
    %v167 = vrot.slane %v166, 2
    %v168 = vadd.f32 %v166, %v167
    %v169 = vrot.slane %v168, 1
    %v170 = vadd.f32 %v168, %v169
    %v171 = vsel %vm54, %v160, 0.0
    %v172 = vsel %vm54, %v161, 0.0
    %v173 = vadd.f32 %v171, %v172
    %v174 = vrot.slane %v173, 4
    %v175 = vadd.f32 %v173, %v174
    %v176 = vrot.slane %v175, 2
    %v177 = vadd.f32 %v175, %v176
    %v178 = vrot.slane %v177, 1
    %v179 = vadd.f32 %v177, %v178
    %s180 = sld [smem:[#allocation6 + $0x7]]
    %v181 = vstv %s180
    %v182 = vadd.f32 %v181, 0.0
    %v183 = vmul.f32 %v182, %v170
    %v184 = vmul.f32 %v182, %v179
    %s185 = sld [smem:[#allocation6 + $0x6]]
    %v186 = vstv %s185
    %v187 = vadd.f32 %v183, %v186
    %v188 = vadd.f32 %v184, %v186
    %v189 = vmul.f32 %v187, %v170
    %v190 = vmul.f32 %v188, %v179
    %s191 = sld [smem:[#allocation6 + $0x5]]
    %v192 = vstv %s191
    %v193 = vadd.f32 %v189, %v192
    %v194 = vadd.f32 %v190, %v192
    %v195 = vmul.f32 %v193, %v170
    %v196 = vmul.f32 %v194, %v179
    %s197 = sld [smem:[#allocation6 + $0x4]]
    %v198 = vstv %s197
    %v199 = vadd.f32 %v195, %v198
    %v200 = vadd.f32 %v196, %v198
    %v201 = vmul.f32 %v199, %v170
    %v202 = vmul.f32 %v200, %v179
    %v203 = vsel %vm54, %v201, 0.0
    %204 = vadd.xlane.f32.xlu0 %v203
    %v205 = vpop.xlane.xlu0 %204
    %v206 = vsel %vm54, %v202, 0.0
    %207 = vadd.xlane.f32.xlu0 %v206
    %v208 = vpop.xlane.xlu0 %207
    %v209 = vadd.f32 %v140, %v205
    %v210 = vadd.f32 %v141, %v208
    %v211 = vmul.f32 %v170, %v52
    %v212 = vmul.f32 %v170, %v53
    %v213 = vmul.f32 %v179, %v52
    %v214 = vmul.f32 %v179, %v53
    %v215 = vsel %vm54, %v211, 0.0
    %216 = vadd.xlane.f32.xlu0 %v215
    %v217 = vpop.xlane.xlu0 %216
    %v218 = vsel %vm54, %v212, 0.0
    %219 = vadd.xlane.f32.xlu0 %v218
    %v220 = vpop.xlane.xlu0 %219
    %v221 = vsel %vm54, %v213, 0.0
    %222 = vadd.xlane.f32.xlu0 %v221
    %v223 = vpop.xlane.xlu0 %222
    %v224 = vsel %vm54, %v214, 0.0
    %225 = vadd.xlane.f32.xlu0 %v224
    %v226 = vpop.xlane.xlu0 %225
    %v227 = vmul.f32 %v217, %v39
    %v228 = vmul.f32 %v220, %v40
    %v229 = vmul.f32 %v223, %v41
    %v230 = vmul.f32 %v226, %v42
    %v231 = vsel %vm54, %v227, 0.0
    %v232 = vsel %vm54, %v228, 0.0
    %v233 = vadd.f32 %v231, %v232
    %v234 = vrot.slane %v233, 4
    %v235 = vadd.f32 %v233, %v234
    %v236 = vrot.slane %v235, 2
    %v237 = vadd.f32 %v235, %v236
    %v238 = vrot.slane %v237, 1
    %v239 = vadd.f32 %v237, %v238
    %v240 = vsel %vm54, %v229, 0.0
    %v241 = vsel %vm54, %v230, 0.0
    %v242 = vadd.f32 %v240, %v241
    %v243 = vrot.slane %v242, 4
    %v244 = vadd.f32 %v242, %v243
    %v245 = vrot.slane %v244, 2
    %v246 = vadd.f32 %v244, %v245
    %v247 = vrot.slane %v246, 1
    %v248 = vadd.f32 %v246, %v247
    %s249 = sld [smem:[#allocation6 + $0xb]]
    %v250 = vstv %s249
    %v251 = vadd.f32 %v250, 0.0
    %v252 = vmul.f32 %v251, %v239
    %v253 = vmul.f32 %v251, %v248
    %s254 = sld [smem:[#allocation6 + $0xa]]
    %v255 = vstv %s254
    %v256 = vadd.f32 %v252, %v255
    %v257 = vadd.f32 %v253, %v255
    %v258 = vmul.f32 %v256, %v239
    %v259 = vmul.f32 %v257, %v248
    %s260 = sld [smem:[#allocation6 + $0x9]]
    %v261 = vstv %s260
    %v262 = vadd.f32 %v258, %v261
    %v263 = vadd.f32 %v259, %v261
    %v264 = vmul.f32 %v262, %v239
    %v265 = vmul.f32 %v263, %v248
    %s266 = sld [smem:[#allocation6 + $0x8]]
    %v267 = vstv %s266
    %v268 = vadd.f32 %v264, %v267
    %v269 = vadd.f32 %v265, %v267
    %v270 = vmul.f32 %v268, %v239
    %v271 = vmul.f32 %v269, %v248
    %v272 = vsel %vm54, %v270, 0.0
    %273 = vadd.xlane.f32.xlu0 %v272
    %v274 = vpop.xlane.xlu0 %273
    %v275 = vsel %vm54, %v271, 0.0
    %276 = vadd.xlane.f32.xlu0 %v275
    %v277 = vpop.xlane.xlu0 %276
    %v278 = vadd.f32 %v209, %v274
    %v279 = vadd.f32 %v210, %v277
    %280 = vst [vmem:[#allocation7] sm:$0x1] %v278
    %281 = vst [vmem:[#allocation7 + $0x1] sm:$0x1] %v279
    // Predicated region
    $region18: #{tpu_custom_call.1} parent=1 // pred_check
      _
    $region19: #{tpu_custom_call.1} parent=1 // pred_check_branch
      %283 = sbr.rel (0) target = $region21
    $region20: #{tpu_custom_call.1} parent=1 // pred_region
      %s285 = ssub.s32 32, 32
      %286 = vsyncadd [#allocation4], %s285
      %s287 = sshll.u32 [#allocation7], 4
      %s288 = int_to_ptr.vmem [resolvable:$true] %s287
      %293 = dma.vmem_to_hbm [thread:$0]  %s288, 32, %s2, [#allocation4], 16, 16, 1
    $region21: #{tpu_custom_call.1} parent=1 // pred_fallthru
      _
    // Predicated region
    $region22: #{tpu_custom_call.1} parent=1 // pred_check
      _
    $region23: #{tpu_custom_call.1} parent=1 // pred_check_branch
      %295 = sbr.rel (0) target = $region25
    $region24: #{tpu_custom_call.1} parent=1 // pred_region
      %296 = dma.done [#allocation4], 32
    $region25: #{tpu_custom_call.1} parent=1 // pred_fallthru
      _
    %297 = vsyncpa [#allocation3], 1
    %298 = vsyncpa [#allocation4], 1
    %299 = vsyncpa [#allocation5], 1

</llo_original>
